<compile_context>
chip_gen: v6e
topology: v6e:2x2x1
jax: 0.10.0
libtpu: 0.0.40
codegen_flags: <defaults>
</compile_context>

<pallas_src>
import functools

import jax
import jax.numpy as jnp
from jax.experimental import pallas as pl
from jax.experimental.pallas import tpu as pltpu


# ----------------------------------------------------------------------------
# Padding helpers (host side, done once).
# ----------------------------------------------------------------------------
def _pad2(a, rows, cols):
    out = jnp.zeros((rows, cols), a.dtype)
    return out.at[: a.shape[0], : a.shape[1]].set(a)


# ----------------------------------------------------------------------------
# Kernel 1: fused per-layer projection
#   proj = bf16(H) @ bf16([W_self | W_neigh])        (one MXU call, f32 acc)
#   hws  = proj[:, :HP] + bias                        (f32, self part + bias)
#   hwn  = bf16(proj[:, HP:])                         (neighbor part, fed to A@.)
# ----------------------------------------------------------------------------
def _project_kernel(h_ref, wcat_ref, b_ref, hws_ref, hwn_ref):
    hp = hws_ref.shape[-1]
    h = h_ref[...]
    if h.dtype != jnp.bfloat16:           # no-op for the bf16 inter-layer path
        h = h.astype(jnp.bfloat16)
    proj = jnp.dot(h, wcat_ref[...], preferred_element_type=jnp.float32)
    hws_ref[...] = proj[:, :hp] + b_ref[...]
    hwn_ref[...] = proj[:, hp:].astype(jnp.bfloat16)


# ----------------------------------------------------------------------------
# Kernel 2: tiled mean aggregation + epilogue
#   acc[i]  = sum_k A_bin[i,k] @ hwn[k]               (int8 0/1 adjacency stream,
#                                                      bf16 MXU, f32 VMEM acc)
#   out[i]  = hws[i] + inv_deg[i] * acc[i]            (exact mean, f32 epilogue)
#   ReLU fused on the last reduction step.
# hwn_ref is the WHOLE (n, hp) array resident in VMEM; each step slices its
# k-th (tk, hp) chunk.
# ----------------------------------------------------------------------------
def _aggregate_kernel(a_ref, hwn_ref, hws_ref, invdeg_ref, out_ref, acc_ref,
                      *, apply_relu):
    k = pl.program_id(1)
    tk = a_ref.shape[1]

    @pl.when(k == 0)
    def _():
        acc_ref[...] = jnp.zeros_like(acc_ref)

    a = a_ref[...].astype(jnp.bfloat16)          # binary 0/1 -> exact in bf16
    start = pl.multiple_of(k * tk, tk)
    hwn = hwn_ref[pl.ds(start, tk), :]
    acc_ref[...] += jnp.dot(a, hwn, preferred_element_type=jnp.float32)

    @pl.when(k == pl.num_programs(1) - 1)
    def _():
        out = hws_ref[...] + invdeg_ref[...] * acc_ref[...]
        if apply_relu:
            out = jnp.maximum(out, 0.0)
        out_ref[...] = out.astype(out_ref.dtype)


def sage_layer(a_int8, inv_deg, h, wcat_bf16, bias, *, apply_relu,
               tm=1024, tk=2048, tp=256):
    """One SAGEConv('mean') layer.
    a_int8:  [N, N] int8 binary adjacency (dst rows, src cols).
    inv_deg: [N, 1] f32 reciprocal in-degree (clamped at 1).
    h:       [N, Din_p] bf16/f32 lane-padded node features.
    wcat_bf16: [Din_p, 2*HP] bf16  (W_self | W_neigh), bias: [1, HP] f32."""
    n, din_p = h.shape
    hp = bias.shape[-1]

    tp = min(tp, n)
    tm = min(tm, n)
    tk = min(tk, n)
    assert n % tp == 0 and n % tm == 0 and n % tk == 0, "tiles must divide N"

    # --- step 1: fused self/neigh projection (small matmul, row-tiled) -------
    hws, hwn = pl.pallas_call(
        _project_kernel,
        out_shape=(jax.ShapeDtypeStruct((n, hp), jnp.float32),
                   jax.ShapeDtypeStruct((n, hp), jnp.bfloat16)),
        grid=(n // tp,),
        in_specs=[
            pl.BlockSpec((tp, din_p), lambda i: (i, 0)),
            pl.BlockSpec((din_p, 2 * hp), lambda i: (0, 0)),
            pl.BlockSpec((1, hp), lambda i: (0, 0)),
        ],
        out_specs=(
            pl.BlockSpec((tp, hp), lambda i: (i, 0)),
            pl.BlockSpec((tp, hp), lambda i: (i, 0)),
        ),
        compiler_params=pltpu.CompilerParams(
            dimension_semantics=("parallel",)),
    )(h, wcat_bf16, bias)

    # --- step 2: tiled aggregation (the O(N^2 * HP) hot loop) ---------------
    # Bytes: A int8 (n^2), hwn resident once (n*hp*2), hws f32, inv_deg, out bf16.
    cost = pl.CostEstimate(
        flops=2 * n * n * hp + 2 * n * hp,
        transcendentals=0,
        bytes_accessed=n * n + n * hp * 2 + n * hp * 4 + n * 4 + n * hp * 2,
    )
    # Explicit scoped-VMEM budget (safe on v5e 16 MiB default / v7x 64 MiB phys).
    vmem_bytes = (2 * tm * tk                     # A int8, double-buffered
                  + 2 * n * hp * 2                # resident hwn (conservative 2x)
                  + 2 * tm * hp * 4               # hws f32
                  + 2 * tm * 4                    # inv_deg
                  + 2 * tm * hp * 2               # out bf16
                  + tm * hp * 4)                  # f32 acc scratch
    vmem_limit = min(64 * 1024 * 1024, max(16 * 1024 * 1024, 2 * vmem_bytes))

    kernel = functools.partial(_aggregate_kernel, apply_relu=apply_relu)
    out = pl.pallas_call(
        kernel,
        out_shape=jax.ShapeDtypeStruct((n, hp), jnp.bfloat16),
        grid=(n // tm, n // tk),
        in_specs=[
            pl.BlockSpec((tm, tk), lambda i, k: (i, k)),   # A tile (int8, 0/1)
            pl.BlockSpec((n, hp), lambda i, k: (0, 0)),    # hwn: VMEM-resident
            pl.BlockSpec((tm, hp), lambda i, k: (i, 0)),   # H @ W_self + b (f32)
            pl.BlockSpec((tm, 1), lambda i, k: (i, 0)),    # 1/deg (f32)
        ],
        out_specs=pl.BlockSpec((tm, hp), lambda i, k: (i, 0)),
        scratch_shapes=[pltpu.VMEM((tm, hp), jnp.float32)],
        compiler_params=pltpu.CompilerParams(
            dimension_semantics=("parallel", "arbitrary"),
            vmem_limit_bytes=vmem_limit),
        cost_estimate=cost,
    )(a_int8, hwn, hws, inv_deg)
    return out


# ----------------------------------------------------------------------------
# Kernel 3: fused edge predictor MLP (pos+neg edges in one call)
#   e = h_src * h_dst                                   (bf16, VPU)
#   score_slab = L3(ReLU(L2(ReLU(L1(e)))))              (bf16 matmuls, f32 acc)
# Output is a lane-dense (E, 128) slab (w3/b3 zero-padded); real score = col 0.
# ----------------------------------------------------------------------------
def _predictor_kernel(hs_ref, hd_ref, w1_ref, b1_ref, w2_ref, b2_ref,
                      w3_ref, b3_ref, out_ref):
    e = (hs_ref[...] * hd_ref[...]).astype(jnp.bfloat16)
    x = jnp.dot(e, w1_ref[...], preferred_element_type=jnp.float32) + b1_ref[...]
    x = jnp.maximum(x, 0.0)
    x = jnp.dot(x.astype(jnp.bfloat16), w2_ref[...],
                preferred_element_type=jnp.float32) + b2_ref[...]
    x = jnp.maximum(x, 0.0)
    out = jnp.dot(x.astype(jnp.bfloat16), w3_ref[...],
                  preferred_element_type=jnp.float32) + b3_ref[...]
    out_ref[...] = out.astype(out_ref.dtype)


def edge_scores(h_src, h_dst, params, *, te=512):
    """h_src/h_dst: [E, HP] gathered endpoint embeddings. Returns [E, 1] f32."""
    w1, b1, w2, b2, w3, b3 = params
    e, hp = h_src.shape
    out_p = w3.shape[-1]

    te = min(te, max(8, ((e + 7) // 8) * 8))
    e_pad = ((e + te - 1) // te) * te
    if e_pad != e:
        h_src = _pad2(h_src, e_pad, hp)
        h_dst = _pad2(h_dst, e_pad, hp)

    slab = pl.pallas_call(
        _predictor_kernel,
        out_shape=jax.ShapeDtypeStruct((e_pad, out_p), jnp.float32),
        grid=(e_pad // te,),
        in_specs=[
            pl.BlockSpec((te, hp), lambda i: (i, 0)),
            pl.BlockSpec((te, hp), lambda i: (i, 0)),
            pl.BlockSpec(w1.shape, lambda i: (0, 0)),
            pl.BlockSpec(b1.shape, lambda i: (0, 0)),
            pl.BlockSpec(w2.shape, lambda i: (0, 0)),
            pl.BlockSpec(b2.shape, lambda i: (0, 0)),
            pl.BlockSpec(w3.shape, lambda i: (0, 0)),
            pl.BlockSpec(b3.shape, lambda i: (0, 0)),
        ],
        out_specs=pl.BlockSpec((te, out_p), lambda i: (i, 0)),
        compiler_params=pltpu.CompilerParams(
            dimension_semantics=("parallel",)),
    )(h_src, h_dst, w1, b1, w2, b2, w3, b3)
    return slab[:e, :1]


# ----------------------------------------------------------------------------
# Full SAGE forward
# ----------------------------------------------------------------------------
def sage_forward(a_bin_int8, inv_deg, x, layer_params, predictor_params,
                 pos_src, pos_dst, neg_src, neg_dst, *, tm=1024, tk=2048):
    hidden_x = x
    n_layers = len(layer_params)
    for layer_idx, (wcat_bf16, bias) in enumerate(layer_params):
        is_last = layer_idx == n_layers - 1
        hidden_x = sage_layer(a_bin_int8, inv_deg, hidden_x, wcat_bf16, bias,
                              apply_relu=not is_last, tm=tm, tk=tk)

    # Fused pos+neg predictor call; row gather is host-side glue.
    src_idx = jnp.concatenate([pos_src, neg_src])
    dst_idx = jnp.concatenate([pos_dst, neg_dst])
    scores = edge_scores(hidden_x[src_idx], hidden_x[dst_idx], predictor_params)
    n_pos = pos_src.shape[0]
    return scores[:n_pos], scores[n_pos:]


def _init_linear(key, fan_in, fan_out):
    kw, kb = jax.random.split(key)
    bound = 1.0 / jnp.sqrt(jnp.float32(fan_in))
    w = jax.random.uniform(kw, (fan_in, fan_out), jnp.float32, -bound, bound)
    b = jax.random.uniform(kb, (1, fan_out), jnp.float32, -bound, bound)
    return w, b


if __name__ == "__main__":
    key = jax.random.PRNGKey(0)
    N, IN_SIZE, HIDDEN = 256, 16, 32
    DIN_P, HP = 128, 128          # lane-padded feature dims
    N_POS, N_NEG = 8, 8
    # Small tiles for the demo so the (rows x reduction) pipeline actually
    # iterates (grid (2,2)); production defaults are tm=1024, tk=2048.
    TM, TK = 128, 128

    keys = jax.random.split(key, 16)

    # Node features (padded to 128 lanes with zeros, bf16 end-to-end).
    x = jax.random.normal(keys[0], (N, IN_SIZE), jnp.float32)
    x_p = _pad2(x, N, DIN_P).astype(jnp.bfloat16)

    # Deterministic graph: ring + skip-3 edges.  Binary int8 adjacency (exact)
    # + f32 reciprocal degree applied in the aggregation epilogue.
    idx = jnp.arange(N)
    adj = jnp.zeros((N, N), jnp.float32)
    adj = adj.at[idx, (idx + 1) % N].set(1.0)
    adj = adj.at[idx, (idx - 1) % N].set(1.0)
    adj = adj.at[idx, (idx + 3) % N].set(1.0)
    deg = jnp.maximum(adj.sum(axis=1, keepdims=True), 1.0)
    a_bin = adj.astype(jnp.int8)
    inv_deg = (1.0 / deg).astype(jnp.float32)          # [N, 1]

    # Three SAGEConv('mean') layers: W_self/W_neigh concatenated ([Din_p, 2*HP]
    # bf16) + bias ([1, HP] f32), zero-padded to lane-dense shapes.
    layer_dims = [(IN_SIZE, HIDDEN), (HIDDEN, HIDDEN), (HIDDEN, HIDDEN)]
    layer_params = []
    for li, (din, dout) in enumerate(layer_dims):
        ws, _ = _init_linear(keys[1 + 2 * li], din, dout)
        wn, b = _init_linear(keys[2 + 2 * li], din, dout)
        din_p = DIN_P if li == 0 else HP
        ws_p = _pad2(ws, din_p, HP)
        wn_p = _pad2(wn, din_p, HP)
        wcat = jnp.concatenate([ws_p, wn_p], axis=1).astype(jnp.bfloat16)
        layer_params.append((wcat, _pad2(b, 1, HP)))

    # Predictor: Linear(H,H) -> ReLU -> Linear(H,H) -> ReLU -> Linear(H,1);
    # last layer zero-padded to 128 output lanes for lane-dense stores.
    w1, b1 = _init_linear(keys[8], HIDDEN, HIDDEN)
    w2, b2 = _init_linear(keys[9], HIDDEN, HIDDEN)
    w3, b3 = _init_linear(keys[10], HIDDEN, 1)
    predictor_params = (
        _pad2(w1, HP, HP).astype(jnp.bfloat16), _pad2(b1, 1, HP),
        _pad2(w2, HP, HP).astype(jnp.bfloat16), _pad2(b2, 1, HP),
        _pad2(w3, HP, 128).astype(jnp.bfloat16), _pad2(b3, 1, 128),
    )

    # Positive / negative edge endpoint indices.
    pos_src = jax.random.randint(keys[11], (N_POS,), 0, N)
    pos_dst = jax.random.randint(keys[12], (N_POS,), 0, N)
    neg_src = jax.random.randint(keys[13], (N_NEG,), 0, N)
    neg_dst = jax.random.randint(keys[14], (N_NEG,), 0, N)

    hidden_pos, hidden_neg = sage_forward(
        a_bin, inv_deg, x_p, layer_params, predictor_params,
        pos_src, pos_dst, neg_src, neg_dst, tm=TM, tk=TK)
    jax.block_until_ready((hidden_pos, hidden_neg))

    assert hidden_pos.shape == (N_POS, 1) and hidden_neg.shape == (N_NEG, 1)
    assert bool(jnp.all(jnp.isfinite(hidden_pos))) and bool(jnp.all(jnp.isfinite(hidden_neg)))
    print("KERNEL_OK")
</pallas_src>

<mosaic_0001>
module attributes {stable_mosaic.version = 11 : i64} {
  func.func @_project_kernel(%arg0: i32, %arg1: memref<256x128xbf16, #tpu.memory_space<vmem>>, %arg2: memref<128x256xbf16, #tpu.memory_space<vmem>>, %arg3: memref<1x128xf32, #tpu.memory_space<vmem>>, %arg4: memref<256x128xf32, #tpu.memory_space<vmem>>, %arg5: memref<256x128xbf16, #tpu.memory_space<vmem>>) attributes {dimension_semantics = [#tpu.dimension_semantics<parallel>], iteration_bounds = array<i64: 1>, scalar_prefetch = 0 : i64, scratch_operands = 0 : i64, tpu.core_type = #tpu.core_type<tc>, window_params = [{transform_indices = @transform_0, window_bounds = array<i64: 256, 128>}, {pipeline_mode = #tpu.pipeline_mode<synchronous>, transform_indices = @transform_1, window_bounds = array<i64: 128, 256>}, {pipeline_mode = #tpu.pipeline_mode<synchronous>, transform_indices = @transform_2, window_bounds = array<i64: 1, 128>}, {transform_indices = @transform_3, window_bounds = array<i64: 256, 128>}, {transform_indices = @transform_4, window_bounds = array<i64: 256, 128>}]} {
    %c0 = arith.constant 0 : index
    %c0_0 = arith.constant 0 : index
    %0 = vector.load %arg1[%c0, %c0_0] : memref<256x128xbf16, #tpu.memory_space<vmem>>, vector<256x128xbf16>
    %c0_1 = arith.constant 0 : index
    %c0_2 = arith.constant 0 : index
    %1 = vector.load %arg2[%c0_1, %c0_2] : memref<128x256xbf16, #tpu.memory_space<vmem>>, vector<128x256xbf16>
    %cst = arith.constant dense<0.000000e+00> : vector<256x256xf32>
    %2 = tpu.matmul %0, %1, %cst {dimension_numbers = #tpu.dot_dimension_numbers<[1], [0], [0], [1], [0, 0, 1, 1], [], []>} : vector<256x128xbf16>, vector<128x256xbf16>, vector<256x256xf32> -> vector<256x256xf32>
    %3 = vector.extract_strided_slice %2 {offsets = [0, 0], sizes = [256, 128], strides = [1, 1]} : vector<256x256xf32> to vector<256x128xf32>
    %c0_3 = arith.constant 0 : index
    %c0_4 = arith.constant 0 : index
    %4 = vector.load %arg3[%c0_3, %c0_4] : memref<1x128xf32, #tpu.memory_space<vmem>>, vector<1x128xf32>
    %5 = vector.broadcast %4 : vector<1x128xf32> to vector<256x128xf32>
    %6 = arith.addf %3, %5 : vector<256x128xf32>
    %c0_5 = arith.constant 0 : index
    %c0_6 = arith.constant 0 : index
    %7 = vector.load %arg4[%c0_5, %c0_6] : memref<256x128xf32, #tpu.memory_space<vmem>>, vector<256x128xf32>
    tpu.vector_store %arg4[%c0_5, %c0_6], %6 {strides = array<i32>} : memref<256x128xf32, #tpu.memory_space<vmem>>, vector<256x128xf32>,
    %8 = vector.extract_strided_slice %2 {offsets = [0, 128], sizes = [256, 128], strides = [1, 1]} : vector<256x256xf32> to vector<256x128xf32>
    %9 = arith.truncf %8 : vector<256x128xf32> to vector<256x128xbf16>
    %c0_7 = arith.constant 0 : index
    %c0_8 = arith.constant 0 : index
    %10 = vector.load %arg5[%c0_7, %c0_8] : memref<256x128xbf16, #tpu.memory_space<vmem>>, vector<256x128xbf16>
    tpu.vector_store %arg5[%c0_7, %c0_8], %9 {strides = array<i32>} : memref<256x128xbf16, #tpu.memory_space<vmem>>, vector<256x128xbf16>,
    return
  }
  func.func @transform_0(%arg0: i32) -> (i32, i32) {
    %c0_i32 = arith.constant 0 : i32
    %c0_i32_0 = arith.constant 0 : i32
    return %arg0, %c0_i32 : i32, i32
  }
  func.func @transform_1(%arg0: i32) -> (i32, i32) {
    %c0_i32 = arith.constant 0 : i32
    %c0_i32_0 = arith.constant 0 : i32
    %c0_i32_1 = arith.constant 0 : i32
    return %c0_i32, %c0_i32_0 : i32, i32
  }
  func.func @transform_2(%arg0: i32) -> (i32, i32) {
    %c0_i32 = arith.constant 0 : i32
    %c0_i32_0 = arith.constant 0 : i32
    %c0_i32_1 = arith.constant 0 : i32
    return %c0_i32, %c0_i32_0 : i32, i32
  }
  func.func @transform_3(%arg0: i32) -> (i32, i32) {
    %c0_i32 = arith.constant 0 : i32
    %c0_i32_0 = arith.constant 0 : i32
    return %arg0, %c0_i32 : i32, i32
  }
  func.func @transform_4(%arg0: i32) -> (i32, i32) {
    %c0_i32 = arith.constant 0 : i32
    %c0_i32_0 = arith.constant 0 : i32
    return %arg0, %c0_i32 : i32, i32
  }
}

</mosaic_0001>

<llo_original>
// kernel: tpu_custom_call.1
$region0: #{tpu_custom_call.1}
  #allocation0 [shape = 'u32[]', space=smem, size = 0x4, offset = 0x4, fixed_abs, tag = 'smem constant byte address 0x4 - core index']
  #allocation1 [shape = 'u32[144,128]{1,0:T(1,128)}', space=vmem, size = 0x12000, scoped, tag = 'internal scratch']
  %s0 = inlined_call_operand.hbm [shape: bf16[256,128], index: 0, kind: input, shape index: {}]
  %s1 = inlined_call_operand.hbm [shape: bf16[128,256], index: 1, kind: input, shape index: {}]
  %s2 = inlined_call_operand.vmem [shape: f32[1,128], index: 2, kind: input, shape index: {}]
  %s3 = inlined_call_operand.hbm [shape: f32[256,128], index: 3, kind: output, shape index: {0}]
  %s4 = inlined_call_operand.hbm [shape: bf16[256,128], index: 4, kind: output, shape index: {1}]
  %5 = xla_tuple %s3, %s4
  %s6 = sld [smem:[#allocation0]]
  $region38: #{tpu_custom_call.1} parent=0
    _
  %s8 = ssub.s32 1, %s6
  %s9 = scalar_select 0, %s8, %s6
  $region1: #{tpu_custom_call.1} parent=0
    #allocation2 [shape = 'u8[65536]{0}', space=vmem, size = 0x10000, scoped, tag = 'input window, operand 0, single buffered']
    #allocation3 [shape = 's32[1]{0}', space=sflag, size = 0x4, scoped, tag = 'scoped memory for tpu_custom_call.1']
    #allocation4 [shape = 's32[1]{0}', space=sflag, size = 0x4, scoped, tag = 'scoped memory for tpu_custom_call.1']
    #allocation5 [shape = 'u8[65536]{0}', space=vmem, size = 0x10000, scoped, tag = 'input window, operand 1, single buffered']
    #allocation6 [shape = 's32[1]{0}', space=sflag, size = 0x4, scoped, tag = 'scoped memory for tpu_custom_call.1']
    #allocation7 [shape = 'u8[131072]{0}', space=vmem, size = 0x20000, scoped, tag = 'output window, operand 0, single buffered']
    #allocation8 [shape = 'u8[65536]{0}', space=vmem, size = 0x10000, scoped, tag = 'output window, operand 1, single buffered']
    #allocation9 [shape = 's32[1]{0}', space=sflag, size = 0x4, scoped, tag = 'scoped memory for tpu_custom_call.1']
    %10 = vsyncpa [#allocation3], 0
    %11 = vsyncpa [#allocation6], 0
    %12 = vsyncpa [#allocation4], 0
    %13 = vsyncpa [#allocation9], 0
    // Predicated region
    $region2: #{tpu_custom_call.1} parent=1 // pred_check
      _
    $region3: #{tpu_custom_call.1} parent=1 // pred_check_branch
      %15 = sbr.rel (0) target = $region5
    $region4: #{tpu_custom_call.1} parent=1 // pred_region
      %s17 = ssub.s32 2048, 2048
      %18 = vsyncadd [#allocation3], %s17
      %s19 = sshll.u32 [#allocation2], 4
      %s20 = int_to_ptr.vmem [resolvable:$true] %s19
      %25 = dma.hbm_to_vmem [thread:$0]  %s0, 2048, %s20, [#allocation3], 64, 64, 4
    $region5: #{tpu_custom_call.1} parent=1 // pred_fallthru
      _
    // Predicated region
    $region6: #{tpu_custom_call.1} parent=1 // pred_check
      _
    $region7: #{tpu_custom_call.1} parent=1 // pred_check_branch
      %27 = sbr.rel (0) target = $region9
    $region8: #{tpu_custom_call.1} parent=1 // pred_region
      %s29 = ssub.s32 2048, 2048
      %30 = vsyncadd [#allocation6], %s29
      %s31 = sshll.u32 [#allocation5], 4
      %s32 = int_to_ptr.vmem [resolvable:$true] %s31
      %37 = dma.hbm_to_vmem [thread:$0]  %s1, 2048, %s32, [#allocation6], 128, 128, 8
    $region9: #{tpu_custom_call.1} parent=1 // pred_fallthru
      _
    // Predicated region
    $region10: #{tpu_custom_call.1} parent=1 // pred_check
      _
    $region11: #{tpu_custom_call.1} parent=1 // pred_check_branch
      %39 = sbr.rel (0) target = $region13
    $region12: #{tpu_custom_call.1} parent=1 // pred_region
      _
    $region13: #{tpu_custom_call.1} parent=1 // pred_fallthru
      _
    // Predicated region
    $region14: #{tpu_custom_call.1} parent=1 // pred_check
      _
    $region15: #{tpu_custom_call.1} parent=1 // pred_check_branch
      %41 = sbr.rel (0) target = $region17
    $region16: #{tpu_custom_call.1} parent=1 // pred_region
      %42 = dma.done [#allocation3], 2048
    $region17: #{tpu_custom_call.1} parent=1 // pred_fallthru
      _
    // Predicated region
    $region18: #{tpu_custom_call.1} parent=1 // pred_check
      _
    $region19: #{tpu_custom_call.1} parent=1 // pred_check_branch
      %44 = sbr.rel (0) target = $region21
    $region20: #{tpu_custom_call.1} parent=1 // pred_region
      %45 = dma.done [#allocation6], 2048
    $region21: #{tpu_custom_call.1} parent=1 // pred_fallthru
      _
    %v47 = vld [vmem:[#allocation2] sm:$0xf]
    %v48 = vld [vmem:[#allocation2 + $0x4] sm:$0xf]
    %v49 = vld [vmem:[#allocation2 + $0x8] sm:$0xf]
    %v50 = vld [vmem:[#allocation2 + $0xc] sm:$0xf]
    %v51 = vld [vmem:[#allocation2 + $0x10] sm:$0xf]
    %v52 = vld [vmem:[#allocation2 + $0x14] sm:$0xf]
    %v53 = vld [vmem:[#allocation2 + $0x18] sm:$0xf]
    %v54 = vld [vmem:[#allocation2 + $0x1c] sm:$0xf]
    %v55 = vld [vmem:[#allocation2 + $0x20] sm:$0xf]
    %v56 = vld [vmem:[#allocation2 + $0x24] sm:$0xf]
    %v57 = vld [vmem:[#allocation2 + $0x28] sm:$0xf]
    %v58 = vld [vmem:[#allocation2 + $0x2c] sm:$0xf]
    %v59 = vld [vmem:[#allocation2 + $0x30] sm:$0xf]
    %v60 = vld [vmem:[#allocation2 + $0x34] sm:$0xf]
    %v61 = vld [vmem:[#allocation2 + $0x38] sm:$0xf]
    %v62 = vld [vmem:[#allocation2 + $0x3c] sm:$0xf]
    %v63 = vld [vmem:[#allocation2 + $0x40] sm:$0xf]
    %v64 = vld [vmem:[#allocation2 + $0x44] sm:$0xf]
    %v65 = vld [vmem:[#allocation2 + $0x48] sm:$0xf]
    %v66 = vld [vmem:[#allocation2 + $0x4c] sm:$0xf]
    %v67 = vld [vmem:[#allocation2 + $0x50] sm:$0xf]
    %v68 = vld [vmem:[#allocation2 + $0x54] sm:$0xf]
    %v69 = vld [vmem:[#allocation2 + $0x58] sm:$0xf]
    %v70 = vld [vmem:[#allocation2 + $0x5c] sm:$0xf]
    %v71 = vld [vmem:[#allocation2 + $0x60] sm:$0xf]
    %v72 = vld [vmem:[#allocation2 + $0x64] sm:$0xf]
    %v73 = vld [vmem:[#allocation2 + $0x68] sm:$0xf]
    %v74 = vld [vmem:[#allocation2 + $0x6c] sm:$0xf]
    %v75 = vld [vmem:[#allocation2 + $0x70] sm:$0xf]
    %v76 = vld [vmem:[#allocation2 + $0x74] sm:$0xf]
    %v77 = vld [vmem:[#allocation2 + $0x78] sm:$0xf]
    %v78 = vld [vmem:[#allocation2 + $0x7c] sm:$0xf]
    %v79 = vld [vmem:[#allocation5] sm:$0xff]
    %v80 = vld [vmem:[#allocation5 + $0x8] sm:$0xff]
    %v81 = vld [vmem:[#allocation5 + $0x10] sm:$0xff]
    %v82 = vld [vmem:[#allocation5 + $0x18] sm:$0xff]
    %v83 = vld [vmem:[#allocation5 + $0x20] sm:$0xff]
    %v84 = vld [vmem:[#allocation5 + $0x28] sm:$0xff]
    %v85 = vld [vmem:[#allocation5 + $0x30] sm:$0xff]
    %v86 = vld [vmem:[#allocation5 + $0x38] sm:$0xff]
    %v87 = vld [vmem:[#allocation5 + $0x40] sm:$0xff]
    %v88 = vld [vmem:[#allocation5 + $0x48] sm:$0xff]
    %v89 = vld [vmem:[#allocation5 + $0x50] sm:$0xff]
    %v90 = vld [vmem:[#allocation5 + $0x58] sm:$0xff]
    %v91 = vld [vmem:[#allocation5 + $0x60] sm:$0xff]
    %v92 = vld [vmem:[#allocation5 + $0x68] sm:$0xff]
    %v93 = vld [vmem:[#allocation5 + $0x70] sm:$0xff]
    %v94 = vld [vmem:[#allocation5 + $0x78] sm:$0xff]
    %v127 = vunpack.c.l.b16 %v47
    %v128 = vunpack.c.l.b16 %v48
    %v129 = vunpack.c.l.b16 %v49
    %v130 = vunpack.c.l.b16 %v50
    %v131 = vunpack.c.l.b16 %v51
    %v132 = vunpack.c.l.b16 %v52
    %v133 = vunpack.c.l.b16 %v53
    %v134 = vunpack.c.l.b16 %v54
    %v135 = vunpack.c.l.b16 %v55
    %v136 = vunpack.c.l.b16 %v56
    %v137 = vunpack.c.l.b16 %v57
    %v138 = vunpack.c.l.b16 %v58
    %v139 = vunpack.c.l.b16 %v59
    %v140 = vunpack.c.l.b16 %v60
    %v141 = vunpack.c.l.b16 %v61
    %v142 = vunpack.c.l.b16 %v62
    %v143 = vunpack.c.l.b16 %v63
    %v144 = vunpack.c.l.b16 %v64
    %v145 = vunpack.c.l.b16 %v65
    %v146 = vunpack.c.l.b16 %v66
    %v147 = vunpack.c.l.b16 %v67
    %v148 = vunpack.c.l.b16 %v68
    %v149 = vunpack.c.l.b16 %v69
    %v150 = vunpack.c.l.b16 %v70
    %v151 = vunpack.c.l.b16 %v71
    %v152 = vunpack.c.l.b16 %v72
    %v153 = vunpack.c.l.b16 %v73
    %v154 = vunpack.c.l.b16 %v74
    %v155 = vunpack.c.l.b16 %v75
    %v156 = vunpack.c.l.b16 %v76
    %v157 = vunpack.c.l.b16 %v77
    %v158 = vunpack.c.l.b16 %v78
    %v159 = vpack.c.b16 %v128, %v127
    %v160 = vpack.c.b16 %v130, %v129
    %v161 = vpack.c.b16 %v132, %v131
    %v162 = vpack.c.b16 %v134, %v133
    %v163 = vpack.c.b16 %v136, %v135
    %v164 = vpack.c.b16 %v138, %v137
    %v165 = vpack.c.b16 %v140, %v139
    %v166 = vpack.c.b16 %v142, %v141
    %v167 = vpack.c.b16 %v144, %v143
    %v168 = vpack.c.b16 %v146, %v145
    %v169 = vpack.c.b16 %v148, %v147
    %v170 = vpack.c.b16 %v150, %v149
    %v171 = vpack.c.b16 %v152, %v151
    %v172 = vpack.c.b16 %v154, %v153
    %v173 = vpack.c.b16 %v156, %v155
    %v174 = vpack.c.b16 %v158, %v157
    %v207 = vunpack.c.l.b16 %v79
    %v208 = vunpack.c.h.b16 %v79
    %v209 = vunpack.c.l.b16 %v80
    %v210 = vunpack.c.h.b16 %v80
    %v211 = vunpack.c.l.b16 %v81
    %v212 = vunpack.c.h.b16 %v81
    %v213 = vunpack.c.l.b16 %v82
    %v214 = vunpack.c.h.b16 %v82
    %v215 = vunpack.c.l.b16 %v83
    %v216 = vunpack.c.h.b16 %v83
    %v217 = vunpack.c.l.b16 %v84
    %v218 = vunpack.c.h.b16 %v84
    %v219 = vunpack.c.l.b16 %v85
    %v220 = vunpack.c.h.b16 %v85
    %v221 = vunpack.c.l.b16 %v86
    %v222 = vunpack.c.h.b16 %v86
    %v223 = vunpack.c.l.b16 %v87
    %v224 = vunpack.c.h.b16 %v87
    %v225 = vunpack.c.l.b16 %v88
    %v226 = vunpack.c.h.b16 %v88
    %v227 = vunpack.c.l.b16 %v89
    %v228 = vunpack.c.h.b16 %v89
    %v229 = vunpack.c.l.b16 %v90
    %v230 = vunpack.c.h.b16 %v90
    %v231 = vunpack.c.l.b16 %v91
    %v232 = vunpack.c.h.b16 %v91
    %v233 = vunpack.c.l.b16 %v92
    %v234 = vunpack.c.h.b16 %v92
    %v235 = vunpack.c.l.b16 %v93
    %v236 = vunpack.c.h.b16 %v93
    %v237 = vunpack.c.l.b16 %v94
    %v238 = vunpack.c.h.b16 %v94
    %v239 = vpack.c.b16 %v209, %v207
    %v240 = vpack.c.b16 %v210, %v208
    %v241 = vpack.c.b16 %v213, %v211
    %v242 = vpack.c.b16 %v214, %v212
    %v243 = vpack.c.b16 %v217, %v215
    %v244 = vpack.c.b16 %v218, %v216
    %v245 = vpack.c.b16 %v221, %v219
    %v246 = vpack.c.b16 %v222, %v220
    %v247 = vpack.c.b16 %v225, %v223
    %v248 = vpack.c.b16 %v226, %v224
    %v249 = vpack.c.b16 %v229, %v227
    %v250 = vpack.c.b16 %v230, %v228
    %v251 = vpack.c.b16 %v233, %v231
    %v252 = vpack.c.b16 %v234, %v232
    %v253 = vpack.c.b16 %v237, %v235
    %v254 = vpack.c.b16 %v238, %v236
    %271 = vmatprep.subr.bf16.mxu0 %v254
    %272 = vmatpush1.bf16.msra.mxu0 %v253
    %273 = vmatprep.subr.bf16.mxu0 %v252
    %274 = vmatpush1.bf16.msra.mxu0 %v251
    %275 = vmatprep.subr.bf16.mxu0 %v250
    %276 = vmatpush1.bf16.msra.mxu0 %v249
    %277 = vmatprep.subr.bf16.mxu0 %v248
    %278 = vmatpush1.bf16.msra.mxu0 %v247
    %279 = vmatprep.subr.bf16.mxu0 %v246
    %280 = vmatpush1.bf16.msra.mxu0 %v245
    %281 = vmatprep.subr.bf16.mxu0 %v244
    %282 = vmatpush1.bf16.msra.mxu0 %v243
    %283 = vmatprep.subr.bf16.mxu0 %v242
    %284 = vmatpush1.bf16.msra.mxu0 %v241
    %285 = vmatprep.subr.bf16.mxu0 %v240
    %286 = vmatpush1.bf16.msra.mxu0 %v239
    %287 = vmatprep.subr.bf16.mxu0 0
    %288 = vmatpush2.bf16.msra.mxu0 0
    %289 = vmatprep.subr.bf16.mxu0 0
    %290 = vmatpush2.bf16.msra.mxu0 0
    %291 = vmatprep.subr.bf16.mxu0 0
    %292 = vmatpush2.bf16.msra.mxu0 0
    %293 = vmatprep.subr.bf16.mxu0 0
    %294 = vmatpush2.bf16.msra.mxu0 0
    %295 = vmatprep.subr.bf16.mxu0 0
    %296 = vmatpush2.bf16.msra.mxu0 0
    %297 = vmatprep.subr.bf16.mxu0 0
    %298 = vmatpush2.bf16.msra.mxu0 0
    %299 = vmatprep.subr.bf16.mxu0 0
    %300 = vmatpush2.bf16.msra.mxu0 0
    %301 = vmatprep.subr.bf16.mxu0 0
    %302 = vmatpush2.bf16.msra.mxu0 0
    %303 = vmatprep.mubr.bf16.mxu0 0
    %304 = vmatmul.mubr.bf16.gmra.mxu0 %v159
    %v305 = vpop.f32.mrf.mxu0
    %v306 = vadd.f32 0.0, %v305
    %v307 = vpop.f32.mrf.mxu0
    %v308 = vadd.f32 0.0, %v307
    %v309 = vpop.f32.mrf.mxu0
    %v310 = vadd.f32 0.0, %v309
    %v311 = vpop.f32.mrf.mxu0
    %v312 = vadd.f32 0.0, %v311
    %313 = vmatprep.mubr.bf16.mxu0 0
    %314 = vmatmul.mubr.bf16.gmra.mxu0 %v160
    %v315 = vpop.f32.mrf.mxu0
    %v316 = vadd.f32 0.0, %v315
    %v317 = vpop.f32.mrf.mxu0
    %v318 = vadd.f32 0.0, %v317
    %v319 = vpop.f32.mrf.mxu0
    %v320 = vadd.f32 0.0, %v319
    %v321 = vpop.f32.mrf.mxu0
    %v322 = vadd.f32 0.0, %v321
    %323 = vmatprep.mubr.bf16.mxu0 0
    %324 = vmatmul.mubr.bf16.gmra.mxu0 %v161
    %v325 = vpop.f32.mrf.mxu0
    %v326 = vadd.f32 0.0, %v325
    %v327 = vpop.f32.mrf.mxu0
    %v328 = vadd.f32 0.0, %v327
    %v329 = vpop.f32.mrf.mxu0
    %v330 = vadd.f32 0.0, %v329
    %v331 = vpop.f32.mrf.mxu0
    %v332 = vadd.f32 0.0, %v331
    %333 = vmatprep.mubr.bf16.mxu0 0
    %334 = vmatmul.mubr.bf16.gmra.mxu0 %v162
    %v335 = vpop.f32.mrf.mxu0
    %v336 = vadd.f32 0.0, %v335
    %v337 = vpop.f32.mrf.mxu0
    %v338 = vadd.f32 0.0, %v337
    %v339 = vpop.f32.mrf.mxu0
    %v340 = vadd.f32 0.0, %v339
    %v341 = vpop.f32.mrf.mxu0
    %v342 = vadd.f32 0.0, %v341
    %343 = vmatprep.mubr.bf16.mxu0 0
    %344 = vmatmul.mubr.bf16.gmra.mxu0 %v163
    %v345 = vpop.f32.mrf.mxu0
    %v346 = vadd.f32 0.0, %v345
    %v347 = vpop.f32.mrf.mxu0
    %v348 = vadd.f32 0.0, %v347
    %v349 = vpop.f32.mrf.mxu0
    %v350 = vadd.f32 0.0, %v349
    %v351 = vpop.f32.mrf.mxu0
    %v352 = vadd.f32 0.0, %v351
    %353 = vmatprep.mubr.bf16.mxu0 0
    %354 = vmatmul.mubr.bf16.gmra.mxu0 %v164
    %v355 = vpop.f32.mrf.mxu0
    %v356 = vadd.f32 0.0, %v355
    %v357 = vpop.f32.mrf.mxu0
    %v358 = vadd.f32 0.0, %v357
    %v359 = vpop.f32.mrf.mxu0
    %v360 = vadd.f32 0.0, %v359
    %v361 = vpop.f32.mrf.mxu0
    %v362 = vadd.f32 0.0, %v361
    %363 = vmatprep.mubr.bf16.mxu0 0
    %364 = vmatmul.mubr.bf16.gmra.mxu0 %v165
    %v365 = vpop.f32.mrf.mxu0
    %v366 = vadd.f32 0.0, %v365
    %v367 = vpop.f32.mrf.mxu0
    %v368 = vadd.f32 0.0, %v367
    %v369 = vpop.f32.mrf.mxu0
    %v370 = vadd.f32 0.0, %v369
    %v371 = vpop.f32.mrf.mxu0
    %v372 = vadd.f32 0.0, %v371
    %373 = vmatprep.mubr.bf16.mxu0 0
    %374 = vmatmul.mubr.bf16.gmra.mxu0 %v166
    %v375 = vpop.f32.mrf.mxu0
    %v376 = vadd.f32 0.0, %v375
    %v377 = vpop.f32.mrf.mxu0
    %v378 = vadd.f32 0.0, %v377
    %v379 = vpop.f32.mrf.mxu0
    %v380 = vadd.f32 0.0, %v379
    %v381 = vpop.f32.mrf.mxu0
    %v382 = vadd.f32 0.0, %v381
    %383 = vmatprep.mubr.bf16.mxu0 0
    %384 = vmatmul.mubr.bf16.gmra.mxu0 %v167
    %v385 = vpop.f32.mrf.mxu0
    %v386 = vadd.f32 0.0, %v385
    %v387 = vpop.f32.mrf.mxu0
    %v388 = vadd.f32 0.0, %v387
    %v389 = vpop.f32.mrf.mxu0
    %v390 = vadd.f32 0.0, %v389
    %v391 = vpop.f32.mrf.mxu0
    %v392 = vadd.f32 0.0, %v391
    %393 = vmatprep.mubr.bf16.mxu0 0
    %394 = vmatmul.mubr.bf16.gmra.mxu0 %v168
    %v395 = vpop.f32.mrf.mxu0
    %v396 = vadd.f32 0.0, %v395
    %v397 = vpop.f32.mrf.mxu0
    %v398 = vadd.f32 0.0, %v397
    %v399 = vpop.f32.mrf.mxu0
    %v400 = vadd.f32 0.0, %v399
    %v401 = vpop.f32.mrf.mxu0
    %v402 = vadd.f32 0.0, %v401
    %403 = vmatprep.mubr.bf16.mxu0 0
    %404 = vmatmul.mubr.bf16.gmra.mxu0 %v169
    %v405 = vpop.f32.mrf.mxu0
    %v406 = vadd.f32 0.0, %v405
    %v407 = vpop.f32.mrf.mxu0
    %v408 = vadd.f32 0.0, %v407
    %v409 = vpop.f32.mrf.mxu0
    %v410 = vadd.f32 0.0, %v409
    %v411 = vpop.f32.mrf.mxu0
    %v412 = vadd.f32 0.0, %v411
    %413 = vmatprep.mubr.bf16.mxu0 0
    %414 = vmatmul.mubr.bf16.gmra.mxu0 %v170
    %v415 = vpop.f32.mrf.mxu0
    %v416 = vadd.f32 0.0, %v415
    %v417 = vpop.f32.mrf.mxu0
    %v418 = vadd.f32 0.0, %v417
    %v419 = vpop.f32.mrf.mxu0
    %v420 = vadd.f32 0.0, %v419
    %v421 = vpop.f32.mrf.mxu0
    %v422 = vadd.f32 0.0, %v421
    %423 = vmatprep.mubr.bf16.mxu0 0
    %424 = vmatmul.mubr.bf16.gmra.mxu0 %v171
    %v425 = vpop.f32.mrf.mxu0
    %v426 = vadd.f32 0.0, %v425
    %v427 = vpop.f32.mrf.mxu0
    %v428 = vadd.f32 0.0, %v427
    %v429 = vpop.f32.mrf.mxu0
    %v430 = vadd.f32 0.0, %v429
    %v431 = vpop.f32.mrf.mxu0
    %v432 = vadd.f32 0.0, %v431
    %433 = vmatprep.mubr.bf16.mxu0 0
    %434 = vmatmul.mubr.bf16.gmra.mxu0 %v172
    %v435 = vpop.f32.mrf.mxu0
    %v436 = vadd.f32 0.0, %v435
    %v437 = vpop.f32.mrf.mxu0
    %v438 = vadd.f32 0.0, %v437
    %v439 = vpop.f32.mrf.mxu0
    %v440 = vadd.f32 0.0, %v439
    %v441 = vpop.f32.mrf.mxu0
    %v442 = vadd.f32 0.0, %v441
    %443 = vmatprep.mubr.bf16.mxu0 0
    %444 = vmatmul.mubr.bf16.gmra.mxu0 %v173
    %v445 = vpop.f32.mrf.mxu0
    %v446 = vadd.f32 0.0, %v445
    %v447 = vpop.f32.mrf.mxu0
    %v448 = vadd.f32 0.0, %v447
    %v449 = vpop.f32.mrf.mxu0
    %v450 = vadd.f32 0.0, %v449
    %v451 = vpop.f32.mrf.mxu0
    %v452 = vadd.f32 0.0, %v451
    %453 = vmatprep.mubr.bf16.mxu0 0
    %454 = vmatmul.mubr.bf16.gmra.mxu0 %v174
    %v455 = vpop.f32.mrf.mxu0
    %v456 = vadd.f32 0.0, %v455
    %v457 = vpop.f32.mrf.mxu0
    %v458 = vadd.f32 0.0, %v457
    %v459 = vpop.f32.mrf.mxu0
    %v460 = vadd.f32 0.0, %v459
    %v461 = vpop.f32.mrf.mxu0
    %v462 = vadd.f32 0.0, %v461
    %463 = vdwg.mxu0
    %v464 = vld [vmem:[%s2] sm:$0x1]
    %v466 = vlaneseq
    %v467 = vshrl.u32 %v466, 7
    %v468 = vsub.s32 0, %v467
    %v469 = vrot.slane %v464, %v468
    %v471 = vadd.f32 %v306, %v469
    %v472 = vadd.f32 %v310, %v469
    %v473 = vadd.f32 %v316, %v469
    %v474 = vadd.f32 %v320, %v469
    %v475 = vadd.f32 %v326, %v469
    %v476 = vadd.f32 %v330, %v469
    %v477 = vadd.f32 %v336, %v469
    %v478 = vadd.f32 %v340, %v469
    %v479 = vadd.f32 %v346, %v469
    %v480 = vadd.f32 %v350, %v469
    %v481 = vadd.f32 %v356, %v469
    %v482 = vadd.f32 %v360, %v469
    %v483 = vadd.f32 %v366, %v469
    %v484 = vadd.f32 %v370, %v469
    %v485 = vadd.f32 %v376, %v469
    %v486 = vadd.f32 %v380, %v469
    %v487 = vadd.f32 %v386, %v469
    %v488 = vadd.f32 %v390, %v469
    %v489 = vadd.f32 %v396, %v469
    %v490 = vadd.f32 %v400, %v469
    %v491 = vadd.f32 %v406, %v469
    %v492 = vadd.f32 %v410, %v469
    %v493 = vadd.f32 %v416, %v469
    %v494 = vadd.f32 %v420, %v469
    %v495 = vadd.f32 %v426, %v469
    %v496 = vadd.f32 %v430, %v469
    %v497 = vadd.f32 %v436, %v469
    %v498 = vadd.f32 %v440, %v469
    %v499 = vadd.f32 %v446, %v469
    %v500 = vadd.f32 %v450, %v469
    %v501 = vadd.f32 %v456, %v469
    %v502 = vadd.f32 %v460, %v469
    %503 = vst [vmem:[#allocation7] sm:$0xff] %v471
    %504 = vst [vmem:[#allocation7 + $0x8] sm:$0xff] %v472
    %505 = vst [vmem:[#allocation7 + $0x10] sm:$0xff] %v473
    %506 = vst [vmem:[#allocation7 + $0x18] sm:$0xff] %v474
    %507 = vst [vmem:[#allocation7 + $0x20] sm:$0xff] %v475
    %508 = vst [vmem:[#allocation7 + $0x28] sm:$0xff] %v476
    %509 = vst [vmem:[#allocation7 + $0x30] sm:$0xff] %v477
    %510 = vst [vmem:[#allocation7 + $0x38] sm:$0xff] %v478
    %511 = vst [vmem:[#allocation7 + $0x40] sm:$0xff] %v479
    %512 = vst [vmem:[#allocation7 + $0x48] sm:$0xff] %v480
    %513 = vst [vmem:[#allocation7 + $0x50] sm:$0xff] %v481
    %514 = vst [vmem:[#allocation7 + $0x58] sm:$0xff] %v482
    %515 = vst [vmem:[#allocation7 + $0x60] sm:$0xff] %v483
    %516 = vst [vmem:[#allocation7 + $0x68] sm:$0xff] %v484
    %517 = vst [vmem:[#allocation7 + $0x70] sm:$0xff] %v485
    %518 = vst [vmem:[#allocation7 + $0x78] sm:$0xff] %v486
    %519 = vst [vmem:[#allocation7 + $0x80] sm:$0xff] %v487
    %520 = vst [vmem:[#allocation7 + $0x88] sm:$0xff] %v488
    %521 = vst [vmem:[#allocation7 + $0x90] sm:$0xff] %v489
    %522 = vst [vmem:[#allocation7 + $0x98] sm:$0xff] %v490
    %523 = vst [vmem:[#allocation7 + $0xa0] sm:$0xff] %v491
    %524 = vst [vmem:[#allocation7 + $0xa8] sm:$0xff] %v492
    %525 = vst [vmem:[#allocation7 + $0xb0] sm:$0xff] %v493
    %526 = vst [vmem:[#allocation7 + $0xb8] sm:$0xff] %v494
    %527 = vst [vmem:[#allocation7 + $0xc0] sm:$0xff] %v495
    %528 = vst [vmem:[#allocation7 + $0xc8] sm:$0xff] %v496
    %529 = vst [vmem:[#allocation7 + $0xd0] sm:$0xff] %v497
    %530 = vst [vmem:[#allocation7 + $0xd8] sm:$0xff] %v498
    %531 = vst [vmem:[#allocation7 + $0xe0] sm:$0xff] %v499
    %532 = vst [vmem:[#allocation7 + $0xe8] sm:$0xff] %v500
    %533 = vst [vmem:[#allocation7 + $0xf0] sm:$0xff] %v501
    %534 = vst [vmem:[#allocation7 + $0xf8] sm:$0xff] %v502
    %v535 = vpack.c.bf16 %v312, %v308
    %v536 = vpack.c.bf16 %v322, %v318
    %v537 = vpack.c.bf16 %v332, %v328
    %v538 = vpack.c.bf16 %v342, %v338
    %v539 = vpack.c.bf16 %v352, %v348
    %v540 = vpack.c.bf16 %v362, %v358
    %v541 = vpack.c.bf16 %v372, %v368
    %v542 = vpack.c.bf16 %v382, %v378
    %v543 = vpack.c.bf16 %v392, %v388
    %v544 = vpack.c.bf16 %v402, %v398
    %v545 = vpack.c.bf16 %v412, %v408
    %v546 = vpack.c.bf16 %v422, %v418
    %v547 = vpack.c.bf16 %v432, %v428
    %v548 = vpack.c.bf16 %v442, %v438
    %v549 = vpack.c.bf16 %v452, %v448
    %v550 = vpack.c.bf16 %v462, %v458
    %v567 = vunpack.c.l.b16 %v535
    %v568 = vunpack.c.h.b16 %v535
    %v569 = vunpack.c.l.b16 %v536
    %v570 = vunpack.c.h.b16 %v536
    %v571 = vunpack.c.l.b16 %v537
    %v572 = vunpack.c.h.b16 %v537
    %v573 = vunpack.c.l.b16 %v538
    %v574 = vunpack.c.h.b16 %v538
    %v575 = vunpack.c.l.b16 %v539
    %v576 = vunpack.c.h.b16 %v539
    %v577 = vunpack.c.l.b16 %v540
    %v578 = vunpack.c.h.b16 %v540
    %v579 = vunpack.c.l.b16 %v541
    %v580 = vunpack.c.h.b16 %v541
    %v581 = vunpack.c.l.b16 %v542
    %v582 = vunpack.c.h.b16 %v542
    %v583 = vunpack.c.l.b16 %v543
    %v584 = vunpack.c.h.b16 %v543
    %v585 = vunpack.c.l.b16 %v544
    %v586 = vunpack.c.h.b16 %v544
    %v587 = vunpack.c.l.b16 %v545
    %v588 = vunpack.c.h.b16 %v545
    %v589 = vunpack.c.l.b16 %v546
    %v590 = vunpack.c.h.b16 %v546
    %v591 = vunpack.c.l.b16 %v547
    %v592 = vunpack.c.h.b16 %v547
    %v593 = vunpack.c.l.b16 %v548
    %v594 = vunpack.c.h.b16 %v548
    %v595 = vunpack.c.l.b16 %v549
    %v596 = vunpack.c.h.b16 %v549
    %v597 = vunpack.c.l.b16 %v550
    %v598 = vunpack.c.h.b16 %v550
    %v599 = vpack.c.b16 %v567, %v567
    %v600 = vpack.c.b16 %v568, %v568
    %v601 = vpack.c.b16 %v569, %v569
    %v602 = vpack.c.b16 %v570, %v570
    %v603 = vpack.c.b16 %v571, %v571
    %v604 = vpack.c.b16 %v572, %v572
    %v605 = vpack.c.b16 %v573, %v573
    %v606 = vpack.c.b16 %v574, %v574
    %v607 = vpack.c.b16 %v575, %v575
    %v608 = vpack.c.b16 %v576, %v576
    %v609 = vpack.c.b16 %v577, %v577
    %v610 = vpack.c.b16 %v578, %v578
    %v611 = vpack.c.b16 %v579, %v579
    %v612 = vpack.c.b16 %v580, %v580
    %v613 = vpack.c.b16 %v581, %v581
    %v614 = vpack.c.b16 %v582, %v582
    %v615 = vpack.c.b16 %v583, %v583
    %v616 = vpack.c.b16 %v584, %v584
    %v617 = vpack.c.b16 %v585, %v585
    %v618 = vpack.c.b16 %v586, %v586
    %v619 = vpack.c.b16 %v587, %v587
    %v620 = vpack.c.b16 %v588, %v588
    %v621 = vpack.c.b16 %v589, %v589
    %v622 = vpack.c.b16 %v590, %v590
    %v623 = vpack.c.b16 %v591, %v591
    %v624 = vpack.c.b16 %v592, %v592
    %v625 = vpack.c.b16 %v593, %v593
    %v626 = vpack.c.b16 %v594, %v594
    %v627 = vpack.c.b16 %v595, %v595
    %v628 = vpack.c.b16 %v596, %v596
    %v629 = vpack.c.b16 %v597, %v597
    %v630 = vpack.c.b16 %v598, %v598
    %663 = vst [vmem:[#allocation8] sm:$0xf] %v599
    %664 = vst [vmem:[#allocation8 + $0x4] sm:$0xf] %v600
    %665 = vst [vmem:[#allocation8 + $0x8] sm:$0xf] %v601
    %666 = vst [vmem:[#allocation8 + $0xc] sm:$0xf] %v602
    %667 = vst [vmem:[#allocation8 + $0x10] sm:$0xf] %v603
    %668 = vst [vmem:[#allocation8 + $0x14] sm:$0xf] %v604
    %669 = vst [vmem:[#allocation8 + $0x18] sm:$0xf] %v605
    %670 = vst [vmem:[#allocation8 + $0x1c] sm:$0xf] %v606
    %671 = vst [vmem:[#allocation8 + $0x20] sm:$0xf] %v607
    %672 = vst [vmem:[#allocation8 + $0x24] sm:$0xf] %v608
    %673 = vst [vmem:[#allocation8 + $0x28] sm:$0xf] %v609
    %674 = vst [vmem:[#allocation8 + $0x2c] sm:$0xf] %v610
    %675 = vst [vmem:[#allocation8 + $0x30] sm:$0xf] %v611
    %676 = vst [vmem:[#allocation8 + $0x34] sm:$0xf] %v612
    %677 = vst [vmem:[#allocation8 + $0x38] sm:$0xf] %v613
    %678 = vst [vmem:[#allocation8 + $0x3c] sm:$0xf] %v614
    %679 = vst [vmem:[#allocation8 + $0x40] sm:$0xf] %v615
    %680 = vst [vmem:[#allocation8 + $0x44] sm:$0xf] %v616
    %681 = vst [vmem:[#allocation8 + $0x48] sm:$0xf] %v617
    %682 = vst [vmem:[#allocation8 + $0x4c] sm:$0xf] %v618
    %683 = vst [vmem:[#allocation8 + $0x50] sm:$0xf] %v619
    %684 = vst [vmem:[#allocation8 + $0x54] sm:$0xf] %v620
    %685 = vst [vmem:[#allocation8 + $0x58] sm:$0xf] %v621
    %686 = vst [vmem:[#allocation8 + $0x5c] sm:$0xf] %v622
    %687 = vst [vmem:[#allocation8 + $0x60] sm:$0xf] %v623
    %688 = vst [vmem:[#allocation8 + $0x64] sm:$0xf] %v624
    %689 = vst [vmem:[#allocation8 + $0x68] sm:$0xf] %v625
    %690 = vst [vmem:[#allocation8 + $0x6c] sm:$0xf] %v626
    %691 = vst [vmem:[#allocation8 + $0x70] sm:$0xf] %v627
    %692 = vst [vmem:[#allocation8 + $0x74] sm:$0xf] %v628
    %693 = vst [vmem:[#allocation8 + $0x78] sm:$0xf] %v629
    %694 = vst [vmem:[#allocation8 + $0x7c] sm:$0xf] %v630
    // Predicated region
    $region22: #{tpu_custom_call.1} parent=1 // pred_check
      _
    $region23: #{tpu_custom_call.1} parent=1 // pred_check_branch
      %696 = sbr.rel (0) target = $region25
    $region24: #{tpu_custom_call.1} parent=1 // pred_region
      %s698 = ssub.s32 4096, 4096
      %699 = vsyncadd [#allocation4], %s698
      %s700 = sshll.u32 [#allocation7], 4
      %s701 = int_to_ptr.vmem [resolvable:$true] %s700
      %706 = dma.vmem_to_hbm [thread:$0]  %s701, 4096, %s3, [#allocation4], 128, 128, 8
    $region25: #{tpu_custom_call.1} parent=1 // pred_fallthru
      _
    // Predicated region
    $region26: #{tpu_custom_call.1} parent=1 // pred_check
      _
    $region27: #{tpu_custom_call.1} parent=1 // pred_check_branch
      %708 = sbr.rel (0) target = $region29
    $region28: #{tpu_custom_call.1} parent=1 // pred_region
      %s710 = ssub.s32 2048, 2048
      %711 = vsyncadd [#allocation9], %s710
      %s712 = sshll.u32 [#allocation8], 4
      %s713 = int_to_ptr.vmem [resolvable:$true] %s712
      %718 = dma.vmem_to_hbm [thread:$0]  %s713, 2048, %s4, [#allocation9], 64, 64, 4
    $region29: #{tpu_custom_call.1} parent=1 // pred_fallthru
      _
    // Predicated region
    $region30: #{tpu_custom_call.1} parent=1 // pred_check
      _
    $region31: #{tpu_custom_call.1} parent=1 // pred_check_branch
      %720 = sbr.rel (0) target = $region33
    $region32: #{tpu_custom_call.1} parent=1 // pred_region
      %721 = dma.done [#allocation4], 4096
    $region33: #{tpu_custom_call.1} parent=1 // pred_fallthru
      _
    // Predicated region
    $region34: #{tpu_custom_call.1} parent=1 // pred_check
      _
    $region35: #{tpu_custom_call.1} parent=1 // pred_check_branch
      %723 = sbr.rel (0) target = $region37
    $region36: #{tpu_custom_call.1} parent=1 // pred_region
      %724 = dma.done [#allocation9], 2048
    $region37: #{tpu_custom_call.1} parent=1 // pred_fallthru
      _
    %725 = vsyncpa [#allocation3], 1
    %726 = vsyncpa [#allocation6], 1
    %727 = vsyncpa [#allocation4], 1
    %728 = vsyncpa [#allocation9], 1

</llo_original>
